<compile_context>
chip_gen: v5e
topology: v5e:2x2
jax: 0.10.0
libtpu: 0.0.40
codegen_flags: <defaults>
</compile_context>

<pallas_src>
import jax
import jax.numpy as jnp
from jax.experimental import pallas as pl
from jax.experimental.pallas import tpu as pltpu


_NEG_LARGE = -1e30  # bias for padded class columns: can never win the argmax


def _inference_kernel(x_ref, w_ref, b_ref, o_ref, acc_ref, m_ref, i_ref):
    ci = pl.program_id(1)          # class-tile index
    ki = pl.program_id(2)          # reduction-tile index
    nc = pl.num_programs(1)
    nk = pl.num_programs(2)

    # Reset running argmax state at the start of each batch tile's sweep.
    @pl.when(jnp.logical_and(ci == 0, ki == 0))
    def _():
        m_ref[...] = jnp.full_like(m_ref, -jnp.inf)
        i_ref[...] = jnp.zeros_like(i_ref)

    # Reset the logits accumulator at the start of each K sweep.
    @pl.when(ki == 0)
    def _():
        acc_ref[...] = jnp.zeros_like(acc_ref)

    # MXU: (tm, tk) @ (tk, tc), f32 accumulation.
    acc_ref[...] += jnp.dot(
        x_ref[...], w_ref[...], preferred_element_type=jnp.float32
    )

    # Epilogue for this class tile: bias add + running (max, argmax) update.
    @pl.when(ki == nk - 1)
    def _():
        logits = acc_ref[...] + b_ref[...]               # (tm, tc) + (1, tc), f32
        tm, tc = logits.shape
        tile_max = jnp.max(logits, axis=1, keepdims=True)            # (tm, 1)
        col = jax.lax.broadcasted_iota(jnp.int32, (tm, tc), 1) + ci * tc
        tile_arg = jnp.min(
            jnp.where(logits == tile_max, col, jnp.int32(2 ** 30)),
            axis=1, keepdims=True)                                    # (tm, 1)
        better = tile_max > m_ref[...]   # strict '>' keeps the first occurrence
        m_ref[...] = jnp.where(better, tile_max, m_ref[...])
        i_ref[...] = jnp.where(better, tile_arg, i_ref[...])

        # Final class tile: store predictions for this batch tile.
        @pl.when(ci == nc - 1)
        def _():
            o_ref[...] = i_ref[...]


def _round_up(v, m):
    return (v + m - 1) // m * m


def inference(x, w, b, *, cast_to_bf16=True, tm_max=256, tk_max=512, tc_max=512):
    """x: (B, H) f32, w: (H, C) f32, b: (C,) f32 -> (B,) int32 class indices."""
    B, H = x.shape
    Hw, C = w.shape
    assert H == Hw and b.shape == (C,)

    # MXU/lane-aligned tile sizes, capped for VMEM double-buffering.
    tk = tk_max if H > tk_max else _round_up(H, 128)
    tc = tc_max if C > tc_max else _round_up(C, 128)
    tm = tm_max if B > tm_max else B
    Hp = _round_up(H, tk)
    Cp = _round_up(C, tc)
    Bp = _round_up(B, tm)

    mx_dtype = jnp.bfloat16 if cast_to_bf16 else x.dtype

    # Zero-pad operands; padded class columns get a huge negative bias so they
    # never win the argmax; padded batch rows are sliced off at the end.
    xp = jnp.zeros((Bp, Hp), mx_dtype).at[:B, :H].set(x.astype(mx_dtype))
    wp = jnp.zeros((Hp, Cp), mx_dtype).at[:H, :C].set(w.astype(mx_dtype))
    bp = jnp.full((1, Cp), _NEG_LARGE, jnp.float32).at[0, :C].set(
        b.astype(jnp.float32))

    grid = (Bp // tm, Cp // tc, Hp // tk)

    bytes_accessed = (xp.size * xp.dtype.itemsize
                      + wp.size * wp.dtype.itemsize
                      + bp.size * 4 + Bp * 4)

    out = pl.pallas_call(
        _inference_kernel,
        out_shape=jax.ShapeDtypeStruct((Bp, 1), jnp.int32),
        grid_spec=pltpu.PrefetchScalarGridSpec(
            num_scalar_prefetch=0,
            grid=grid,
            in_specs=[
                pl.BlockSpec((tm, tk), lambda mi, ci, ki: (mi, ki)),   # x
                pl.BlockSpec((tk, tc), lambda mi, ci, ki: (ki, ci)),   # W (streamed)
                pl.BlockSpec((1, tc), lambda mi, ci, ki: (0, ci)),     # bias
            ],
            out_specs=pl.BlockSpec((tm, 1), lambda mi, ci, ki: (mi, 0)),
            scratch_shapes=[
                pltpu.VMEM((tm, tc), jnp.float32),   # logits accumulator
                pltpu.VMEM((tm, 1), jnp.float32),    # running max
                pltpu.VMEM((tm, 1), jnp.int32),      # running argmax
            ],
        ),
        compiler_params=pltpu.CompilerParams(
            dimension_semantics=("parallel", "arbitrary", "arbitrary"),
            vmem_limit_bytes=32 * 1024 * 1024,
        ),
        cost_estimate=pl.CostEstimate(
            flops=2 * Bp * Hp * Cp,
            transcendentals=0,
            bytes_accessed=bytes_accessed,
        ),
    )(xp, wp, bp)
    return out[:B, 0]


if __name__ == "__main__":
    key = jax.random.PRNGKey(0)
    kx, kw, kb = jax.random.split(key, 3)

    B, H, C = 8, 32, 16  # small shapes: batch=8, hidden=32, num_classes=16
    x = jax.random.normal(kx, (B, H), dtype=jnp.float32)
    w = jax.random.normal(kw, (H, C), dtype=jnp.float32) * 0.1
    b = jax.random.normal(kb, (C,), dtype=jnp.float32) * 0.1

    # Default (bf16 MXU operands, f32 accumulate + epilogue).
    pred = inference(x, w, b)
    jax.block_until_ready(pred)
    ref_bf16 = jnp.argmax(
        jnp.dot(x.astype(jnp.bfloat16), w.astype(jnp.bfloat16),
                preferred_element_type=jnp.float32) + b,
        axis=1).astype(jnp.int32)
    assert pred.shape == (B,)
    assert bool(jnp.all(pred == ref_bf16))

    # Full-precision path matches the original f32 module semantics.
    pred_f32 = inference(x, w, b, cast_to_bf16=False)
    jax.block_until_ready(pred_f32)
    ref_f32 = jnp.argmax(x @ w + b, axis=1).astype(jnp.int32)
    assert bool(jnp.all(pred_f32 == ref_f32))

    print("KERNEL_OK")
</pallas_src>

<mosaic_0001>
module attributes {stable_mosaic.version = 11 : i64} {
  func.func @_inference_kernel(%arg0: i32, %arg1: i32, %arg2: i32, %arg3: memref<8x128xbf16, #tpu.memory_space<vmem>>, %arg4: memref<128x128xbf16, #tpu.memory_space<vmem>>, %arg5: memref<1x128xf32, #tpu.memory_space<vmem>>, %arg6: memref<8x1xi32, #tpu.memory_space<vmem>>, %arg7: memref<8x128xf32, #tpu.memory_space<vmem>>, %arg8: memref<8x1xf32, #tpu.memory_space<vmem>>, %arg9: memref<8x1xi32, #tpu.memory_space<vmem>>) attributes {dimension_semantics = [#tpu.dimension_semantics<parallel>, #tpu.dimension_semantics<arbitrary>, #tpu.dimension_semantics<arbitrary>], iteration_bounds = array<i64: 1, 1, 1>, scalar_prefetch = 0 : i64, scratch_operands = 3 : i64, tpu.core_type = #tpu.core_type<tc>, window_params = [{transform_indices = @transform_0, window_bounds = array<i64: 8, 128>}, {transform_indices = @transform_1, window_bounds = array<i64: 128, 128>}, {transform_indices = @transform_2, window_bounds = array<i64: 1, 128>}, {transform_indices = @transform_3, window_bounds = array<i64: 8, 1>}]} {
    %c0_i32 = arith.constant 0 : i32
    %0 = arith.cmpi eq, %arg1, %c0_i32 : i32
    %c0_i32_0 = arith.constant 0 : i32
    %1 = arith.cmpi eq, %arg2, %c0_i32_0 : i32
    %2 = arith.andi %0, %1 : i1
    %3 = arith.extui %2 : i1 to i32
    %c0_i32_1 = arith.constant 0 : i32
    %4 = arith.cmpi ne, %3, %c0_i32_1 : i32
    scf.if %4 {
      %cst_13 = arith.constant 0xFF800000 : f32
      %17 = vector.broadcast %cst_13 : f32 to vector<8x1xf32>
      %c0_14 = arith.constant 0 : index
      %c0_15 = arith.constant 0 : index
      %18 = vector.load %arg8[%c0_14, %c0_15] : memref<8x1xf32, #tpu.memory_space<vmem>>, vector<8x1xf32>
      tpu.vector_store %arg8[%c0_14, %c0_15], %17 {strides = array<i32>} : memref<8x1xf32, #tpu.memory_space<vmem>>, vector<8x1xf32>,
      %c0_i32_16 = arith.constant 0 : i32
      %19 = vector.broadcast %c0_i32_16 : i32 to vector<8x1xi32>
      %c0_17 = arith.constant 0 : index
      %c0_18 = arith.constant 0 : index
      %20 = vector.load %arg9[%c0_17, %c0_18] : memref<8x1xi32, #tpu.memory_space<vmem>>, vector<8x1xi32>
      tpu.vector_store %arg9[%c0_17, %c0_18], %19 {strides = array<i32>} : memref<8x1xi32, #tpu.memory_space<vmem>>, vector<8x1xi32>,
    } else {
    }
    %c0_i32_2 = arith.constant 0 : i32
    %5 = arith.cmpi eq, %arg2, %c0_i32_2 : i32
    %6 = arith.extui %5 : i1 to i32
    %c0_i32_3 = arith.constant 0 : i32
    %7 = arith.cmpi ne, %6, %c0_i32_3 : i32
    scf.if %7 {
      %cst_13 = arith.constant 0.000000e+00 : f32
      %17 = vector.broadcast %cst_13 : f32 to vector<8x128xf32>
      %c0_14 = arith.constant 0 : index
      %c0_15 = arith.constant 0 : index
      %18 = vector.load %arg7[%c0_14, %c0_15] : memref<8x128xf32, #tpu.memory_space<vmem>>, vector<8x128xf32>
      tpu.vector_store %arg7[%c0_14, %c0_15], %17 {strides = array<i32>} : memref<8x128xf32, #tpu.memory_space<vmem>>, vector<8x128xf32>,
    } else {
    }
    %c0 = arith.constant 0 : index
    %c0_4 = arith.constant 0 : index
    %8 = vector.load %arg7[%c0, %c0_4] : memref<8x128xf32, #tpu.memory_space<vmem>>, vector<8x128xf32>
    %c0_5 = arith.constant 0 : index
    %c0_6 = arith.constant 0 : index
    %9 = vector.load %arg3[%c0_5, %c0_6] : memref<8x128xbf16, #tpu.memory_space<vmem>>, vector<8x128xbf16>
    %c0_7 = arith.constant 0 : index
    %c0_8 = arith.constant 0 : index
    %10 = vector.load %arg4[%c0_7, %c0_8] : memref<128x128xbf16, #tpu.memory_space<vmem>>, vector<128x128xbf16>
    %cst = arith.constant dense<0.000000e+00> : vector<8x128xf32>
    %11 = tpu.matmul %9, %10, %cst {dimension_numbers = #tpu.dot_dimension_numbers<[1], [0], [0], [1], [0, 0, 1, 1], [], []>} : vector<8x128xbf16>, vector<128x128xbf16>, vector<8x128xf32> -> vector<8x128xf32>
    %12 = arith.addf %8, %11 : vector<8x128xf32>
    %c0_9 = arith.constant 0 : index
    %c0_10 = arith.constant 0 : index
    %13 = vector.load %arg7[%c0_9, %c0_10] : memref<8x128xf32, #tpu.memory_space<vmem>>, vector<8x128xf32>
    tpu.vector_store %arg7[%c0_9, %c0_10], %12 {strides = array<i32>} : memref<8x128xf32, #tpu.memory_space<vmem>>, vector<8x128xf32>,
    %c0_i32_11 = arith.constant 0 : i32
    %14 = arith.cmpi eq, %arg2, %c0_i32_11 : i32
    %15 = arith.extui %14 : i1 to i32
    %c0_i32_12 = arith.constant 0 : i32
    %16 = arith.cmpi ne, %15, %c0_i32_12 : i32
    scf.if %16 {
      %c0_13 = arith.constant 0 : index
      %c0_14 = arith.constant 0 : index
      %17 = vector.load %arg7[%c0_13, %c0_14] : memref<8x128xf32, #tpu.memory_space<vmem>>, vector<8x128xf32>
      %c0_15 = arith.constant 0 : index
      %c0_16 = arith.constant 0 : index
      %18 = vector.load %arg5[%c0_15, %c0_16] : memref<1x128xf32, #tpu.memory_space<vmem>>, vector<1x128xf32>
      %19 = vector.broadcast %18 : vector<1x128xf32> to vector<8x128xf32>
      %20 = arith.addf %17, %19 : vector<8x128xf32>
      %cst_17 = arith.constant dense<0xFF800000> : vector<8xf32>
      %21 = vector.multi_reduction <maximumf>, %20, %cst_17 [1] : vector<8x128xf32> to vector<8xf32>
      %22 = vector.shape_cast %21 : vector<8xf32> to vector<8x1xf32>
      %23 = tpu.iota {dimensions = array<i32: 1>} : vector<8x128xi32>
      %c128_i32 = arith.constant 128 : i32
      %24 = arith.muli %arg1, %c128_i32 : i32
      %25 = vector.broadcast %24 : i32 to vector<8x128xi32>
      %26 = arith.addi %23, %25 : vector<8x128xi32>
      %27 = vector.broadcast %22 : vector<8x1xf32> to vector<8x128xf32>
      %28 = arith.cmpf oeq, %20, %27 : vector<8x128xf32>
      %c1073741824_i32 = arith.constant 1073741824 : i32
      %29 = vector.broadcast %c1073741824_i32 : i32 to vector<8x128xi32>
      %30 = arith.select %28, %26, %29 : vector<8x128xi1>, vector<8x128xi32>
      %cst_18 = arith.constant dense<2147483647> : vector<8xi32>
      %31 = vector.multi_reduction <minsi>, %30, %cst_18 [1] : vector<8x128xi32> to vector<8xi32>
      %32 = vector.shape_cast %31 : vector<8xi32> to vector<8x1xi32>
      %c0_19 = arith.constant 0 : index
      %c0_20 = arith.constant 0 : index
      %33 = vector.load %arg8[%c0_19, %c0_20] : memref<8x1xf32, #tpu.memory_space<vmem>>, vector<8x1xf32>
      %34 = arith.cmpf ogt, %22, %33 : vector<8x1xf32>
      %c0_21 = arith.constant 0 : index
      %c0_22 = arith.constant 0 : index
      %35 = vector.load %arg8[%c0_21, %c0_22] : memref<8x1xf32, #tpu.memory_space<vmem>>, vector<8x1xf32>
      %36 = arith.select %34, %22, %35 : vector<8x1xi1>, vector<8x1xf32>
      %c0_23 = arith.constant 0 : index
      %c0_24 = arith.constant 0 : index
      %37 = vector.load %arg8[%c0_23, %c0_24] : memref<8x1xf32, #tpu.memory_space<vmem>>, vector<8x1xf32>
      tpu.vector_store %arg8[%c0_23, %c0_24], %36 {strides = array<i32>} : memref<8x1xf32, #tpu.memory_space<vmem>>, vector<8x1xf32>,
      %c0_25 = arith.constant 0 : index
      %c0_26 = arith.constant 0 : index
      %38 = vector.load %arg9[%c0_25, %c0_26] : memref<8x1xi32, #tpu.memory_space<vmem>>, vector<8x1xi32>
      %39 = arith.select %34, %32, %38 : vector<8x1xi1>, vector<8x1xi32>
      %c0_27 = arith.constant 0 : index
      %c0_28 = arith.constant 0 : index
      %40 = vector.load %arg9[%c0_27, %c0_28] : memref<8x1xi32, #tpu.memory_space<vmem>>, vector<8x1xi32>
      tpu.vector_store %arg9[%c0_27, %c0_28], %39 {strides = array<i32>} : memref<8x1xi32, #tpu.memory_space<vmem>>, vector<8x1xi32>,
      %c0_i32_29 = arith.constant 0 : i32
      %41 = arith.cmpi eq, %arg1, %c0_i32_29 : i32
      %42 = arith.extui %41 : i1 to i32
      %c0_i32_30 = arith.constant 0 : i32
      %43 = arith.cmpi ne, %42, %c0_i32_30 : i32
      scf.if %43 {
        %c0_31 = arith.constant 0 : index
        %c0_32 = arith.constant 0 : index
        %44 = vector.load %arg9[%c0_31, %c0_32] : memref<8x1xi32, #tpu.memory_space<vmem>>, vector<8x1xi32>
        %c0_33 = arith.constant 0 : index
        %c0_34 = arith.constant 0 : index
        %45 = vector.load %arg6[%c0_33, %c0_34] : memref<8x1xi32, #tpu.memory_space<vmem>>, vector<8x1xi32>
        tpu.vector_store %arg6[%c0_33, %c0_34], %44 {strides = array<i32>} : memref<8x1xi32, #tpu.memory_space<vmem>>, vector<8x1xi32>,
      } else {
      }
    } else {
    }
    return
  }
  func.func @transform_0(%arg0: i32, %arg1: i32, %arg2: i32) -> (i32, i32) {
    %c0_i32 = arith.constant 0 : i32
    return %arg0, %arg2 : i32, i32
  }
  func.func @transform_1(%arg0: i32, %arg1: i32, %arg2: i32) -> (i32, i32) {
    %c0_i32 = arith.constant 0 : i32
    return %arg2, %arg1 : i32, i32
  }
  func.func @transform_2(%arg0: i32, %arg1: i32, %arg2: i32) -> (i32, i32) {
    %c0_i32 = arith.constant 0 : i32
    %c0_i32_0 = arith.constant 0 : i32
    return %c0_i32, %arg1 : i32, i32
  }
  func.func @transform_3(%arg0: i32, %arg1: i32, %arg2: i32) -> (i32, i32) {
    %c0_i32 = arith.constant 0 : i32
    %c0_i32_0 = arith.constant 0 : i32
    return %arg0, %c0_i32 : i32, i32
  }
}

</mosaic_0001>

<llo_original>
// kernel: tpu_custom_call.1
$region0: #{tpu_custom_call.1}
  #allocation0 [shape = 'u32[]', space=smem, size = 0x4, offset = 0x4, fixed_abs, tag = 'smem constant byte address 0x4 - core index']
  #allocation1 [shape = 'u32[72,128]{1,0:T(1,128)}', space=vmem, size = 0x9000, scoped, tag = 'internal scratch']
  #allocation2 [shape = 'f32[8,128]{1,0:T(8,128)}', space=vmem, size = 0x1000, scoped, tag = 'scratch operand']
  #allocation3 [shape = 'f32[8,1]{1,0:T(8,128)}', space=vmem, size = 0x1000, scoped, tag = 'scratch operand']
  #allocation4 [shape = 's32[8,1]{1,0:T(8,128)}', space=vmem, size = 0x1000, scoped, tag = 'scratch operand']
  %s0 = inlined_call_operand.hbm [shape: bf16[8,128], index: 0, kind: input, shape index: {}]
  %s1 = inlined_call_operand.hbm [shape: bf16[128,128], index: 1, kind: input, shape index: {}]
  %s2 = inlined_call_operand.vmem [shape: f32[1,128], index: 2, kind: input, shape index: {}]
  %s3 = inlined_call_operand.vmem [shape: s32[8,1], index: 3, kind: output, shape index: {}]
  %s4 = sld [smem:[#allocation0]]
  $region46: #{tpu_custom_call.1} parent=0
    _
  %s6 = ssub.s32 1, %s4
  %s7 = scalar_select 0, %s6, %s4
  $region1: #{tpu_custom_call.1} parent=0
    #allocation5 [shape = 'u8[2048]{0}', space=vmem, size = 0x800, scoped, tag = 'input window, operand 0, single buffered']
    #allocation6 [shape = 's32[1]{0}', space=sflag, size = 0x4, scoped, tag = 'scoped memory for tpu_custom_call.1']
    #allocation7 [shape = 'u8[32768]{0}', space=vmem, size = 0x8000, scoped, tag = 'input window, operand 1, single buffered']
    #allocation8 [shape = 's32[1]{0}', space=sflag, size = 0x4, scoped, tag = 'scoped memory for tpu_custom_call.1']
    %8 = vsyncpa [#allocation6], 0
    %9 = vsyncpa [#allocation8], 0
    // Predicated region
    $region2: #{tpu_custom_call.1} parent=1 // pred_check
      _
    $region3: #{tpu_custom_call.1} parent=1 // pred_check_branch
      %11 = sbr.rel (0) target = $region5
    $region4: #{tpu_custom_call.1} parent=1 // pred_region
      %13 = vsyncadd [#allocation6], 0
      %s15 = sshll.u32 %s0, 4
      %s16 = int_to_ptr.hbm [resolvable:$true] %s15
      %s17 = sshll.u32 [#allocation5], 4
      %s18 = int_to_ptr.vmem [resolvable:$true] %s17
      %20 = dma.hbm_to_vmem [thread:$0]  %s16, 64, %s18, [#allocation6]
    $region5: #{tpu_custom_call.1} parent=1 // pred_fallthru
      _
    // Predicated region
    $region6: #{tpu_custom_call.1} parent=1 // pred_check
      _
    $region7: #{tpu_custom_call.1} parent=1 // pred_check_branch
      %22 = sbr.rel (0) target = $region9
    $region8: #{tpu_custom_call.1} parent=1 // pred_region
      %24 = vsyncadd [#allocation8], 0
      %s25 = sshll.u32 %s1, 4
      %s26 = int_to_ptr.hbm [resolvable:$true] %s25
      %s27 = sshll.u32 [#allocation7], 4
      %s28 = int_to_ptr.vmem [resolvable:$true] %s27
      %33 = dma.hbm_to_vmem [thread:$0]  %s26, 1024, %s28, [#allocation8], 64, 64, 4
    $region9: #{tpu_custom_call.1} parent=1 // pred_fallthru
      _
    // Predicated region
    $region10: #{tpu_custom_call.1} parent=1 // pred_check
      _
    $region11: #{tpu_custom_call.1} parent=1 // pred_check_branch
      %35 = sbr.rel (0) target = $region13
    $region12: #{tpu_custom_call.1} parent=1 // pred_region
      _
    $region13: #{tpu_custom_call.1} parent=1 // pred_fallthru
      _
    // Predicated region
    $region14: #{tpu_custom_call.1} parent=1 // pred_check
      _
    $region15: #{tpu_custom_call.1} parent=1 // pred_check_branch
      %37 = sbr.rel (0) target = $region17
    $region16: #{tpu_custom_call.1} parent=1 // pred_region
      %39 = dma.done [#allocation6], 64
    $region17: #{tpu_custom_call.1} parent=1 // pred_fallthru
      _
    // Predicated region
    $region18: #{tpu_custom_call.1} parent=1 // pred_check
      _
    $region19: #{tpu_custom_call.1} parent=1 // pred_check_branch
      %41 = sbr.rel (0) target = $region21
    $region20: #{tpu_custom_call.1} parent=1 // pred_region
      %43 = dma.done [#allocation8], 1024
    $region21: #{tpu_custom_call.1} parent=1 // pred_fallthru
      _
    %p44 = scmp.eq.s32.totalorder 0, 0
    %p45 = scmp.eq.s32.totalorder 0, 0
    %p46 = pnand %p44, %p45
    %p47 = pneg %p46
    // Predicated region
    $region22: #{tpu_custom_call.1} parent=1 // pred_check
      _
    $region23: #{tpu_custom_call.1} parent=1 // pred_check_branch
      %49 = sbr.rel (%p46) target = $region25
    $region24: #{tpu_custom_call.1} parent=1 // pred_region
      %vm50 = vcmask 7168
      %51 = vst.msk [vmem:[#allocation3] sm:$0xff] %vm50, -inf
      %52 = vst.msk [vmem:[#allocation4] sm:$0xff] %vm50, 0
    $region25: #{tpu_custom_call.1} parent=1 // pred_fallthru
      _
    // Predicated region
    $region26: #{tpu_custom_call.1} parent=1 // pred_check
      %p53 = pneg %p45
    $region27: #{tpu_custom_call.1} parent=1 // pred_check_branch
      %55 = sbr.rel (%p53) target = $region29
    $region28: #{tpu_custom_call.1} parent=1 // pred_region
      %56 = vst [vmem:[#allocation2] sm:$0xff] 0.0
    $region29: #{tpu_custom_call.1} parent=1 // pred_fallthru
      _
    %v57 = vld [vmem:[#allocation2] sm:$0xff]
    %v58 = vld [vmem:[#allocation5] sm:$0xf]
    %v59 = vld [vmem:[#allocation7] sm:$0xf]
    %v60 = vld [vmem:[#allocation7 + $0x4] sm:$0xf]
    %v61 = vld [vmem:[#allocation7 + $0x8] sm:$0xf]
    %v62 = vld [vmem:[#allocation7 + $0xc] sm:$0xf]
    %v63 = vld [vmem:[#allocation7 + $0x10] sm:$0xf]
    %v64 = vld [vmem:[#allocation7 + $0x14] sm:$0xf]
    %v65 = vld [vmem:[#allocation7 + $0x18] sm:$0xf]
    %v66 = vld [vmem:[#allocation7 + $0x1c] sm:$0xf]
    %v67 = vld [vmem:[#allocation7 + $0x20] sm:$0xf]
    %v68 = vld [vmem:[#allocation7 + $0x24] sm:$0xf]
    %v69 = vld [vmem:[#allocation7 + $0x28] sm:$0xf]
    %v70 = vld [vmem:[#allocation7 + $0x2c] sm:$0xf]
    %v71 = vld [vmem:[#allocation7 + $0x30] sm:$0xf]
    %v72 = vld [vmem:[#allocation7 + $0x34] sm:$0xf]
    %v73 = vld [vmem:[#allocation7 + $0x38] sm:$0xf]
    %v74 = vld [vmem:[#allocation7 + $0x3c] sm:$0xf]
    %v91 = vunpack.c.l.b16 %v59
    %v92 = vunpack.c.l.b16 %v60
    %v93 = vunpack.c.l.b16 %v61
    %v94 = vunpack.c.l.b16 %v62
    %v95 = vunpack.c.l.b16 %v63
    %v96 = vunpack.c.l.b16 %v64
    %v97 = vunpack.c.l.b16 %v65
    %v98 = vunpack.c.l.b16 %v66
    %v99 = vunpack.c.l.b16 %v67
    %v100 = vunpack.c.l.b16 %v68
    %v101 = vunpack.c.l.b16 %v69
    %v102 = vunpack.c.l.b16 %v70
    %v103 = vunpack.c.l.b16 %v71
    %v104 = vunpack.c.l.b16 %v72
    %v105 = vunpack.c.l.b16 %v73
    %v106 = vunpack.c.l.b16 %v74
    %v107 = vpack.c.b16 %v92, %v91
    %v108 = vpack.c.b16 %v94, %v93
    %v109 = vpack.c.b16 %v96, %v95
    %v110 = vpack.c.b16 %v98, %v97
    %v111 = vpack.c.b16 %v100, %v99
    %v112 = vpack.c.b16 %v102, %v101
    %v113 = vpack.c.b16 %v104, %v103
    %v114 = vpack.c.b16 %v106, %v105
    %123 = vmatpush.bf16.msra.mxu0 %v114
    %124 = vmatpush.bf16.msra.mxu0 %v113
    %125 = vmatpush.bf16.msra.mxu0 %v112
    %126 = vmatpush.bf16.msra.mxu0 %v111
    %127 = vmatpush.bf16.msra.mxu0 %v110
    %128 = vmatpush.bf16.msra.mxu0 %v109
    %129 = vmatpush.bf16.msra.mxu0 %v108
    %130 = vmatpush.bf16.msra.mxu0 %v107
    %131 = vmatmul.bf16.gmra.mxu0 %v58
    %v132 = vpop.f32.mrf.mxu0
    %v133 = vadd.f32 0.0, %v132
    %v134 = vpop.f32.mrf.mxu0
    %135 = vdwg.mxu0
    %v136 = vadd.f32 %v57, %v133
    %137 = vst [vmem:[#allocation2] sm:$0xff] %v136
    // Predicated region
    $region30: #{tpu_custom_call.1} parent=1 // pred_check
      %p138 = pneg %p45
    $region31: #{tpu_custom_call.1} parent=1 // pred_check_branch
      %140 = sbr.rel (%p138) target = $region33
    $region32: #{tpu_custom_call.1} parent=1 // pred_region
      %v141 = vld [vmem:[#allocation2] sm:$0xff]
      %v142 = vld [vmem:[%s2] sm:$0x1]
      %v144 = vperm.slane %v142, 0
      %v146 = vadd.f32 %v141, %v144
      %147 = vmax.xlane.f32.xlu0 %v146
      %v148 = vpop.xlane.xlu0 %147
      %v149 = vlaneseq
      %v150 = vand.u32 %v149, 127
      %s151 = smul.u32 0, 128
      %v152 = vstv %s151
      %v153 = vadd.s32 %v150, %v152
      %vm154 = vcmp.eq.f32.partialorder %v146, %v148
      %v155 = vsel %vm154, %v153, 1073741824
      %v156 = vand.u32 %v155, 65535
      %v157 = vshra.s32 %v155, 16
      %v158 = vcvt.s32.f32 %v156
      %v159 = vcvt.s32.f32 %v157
      %160 = vmin.xlane.f32.xlu0 %v159
      %v161 = vpop.xlane.xlu0 %160
      %vm162 = vcmp.eq.f32.partialorder %v159, %v161
      %v163 = vsel %vm162, %v158, inf
      %164 = vmin.xlane.f32.xlu0 %v163
      %v165 = vpop.xlane.xlu0 %164
      %v166 = vcvt.f32.s32 %v165
      %v167 = vcvt.f32.s32 %v161
      %v168 = vshll.u32 %v167, 16
      %v169 = vadd.s32 %v168, %v166
      %v170 = vld [vmem:[#allocation3] sm:$0xff]
      %vm171 = vcmp.gt.f32.partialorder %v148, %v170
      %v172 = vsel %vm171, %v148, %v170
      %vm173 = vcmask 7168
      %174 = vst.msk [vmem:[#allocation3] sm:$0xff] %vm173, %v172
      %v175 = vld [vmem:[#allocation4] sm:$0xff]
      %v176 = vsel %vm171, %v169, %v175
      %177 = vst.msk [vmem:[#allocation4] sm:$0xff] %vm173, %v176
      // Predicated region
      $region34: #{tpu_custom_call.1} parent=32 // pred_check
        %p178 = pneg %p44
      $region35: #{tpu_custom_call.1} parent=32 // pred_check_branch
        %180 = sbr.rel (%p178) target = $region37
      $region36: #{tpu_custom_call.1} parent=32 // pred_region
        %v181 = vld [vmem:[#allocation4] sm:$0xff]
        %182 = vst.msk [vmem:[%s3] sm:$0xff] %vm173, %v181
      $region37: #{tpu_custom_call.1} parent=32 // pred_fallthru
        _
    $region33: #{tpu_custom_call.1} parent=1 // pred_fallthru
      _
    // Predicated region
    $region38: #{tpu_custom_call.1} parent=1 // pred_check
      _
    $region39: #{tpu_custom_call.1} parent=1 // pred_check_branch
      %184 = sbr.rel (0) target = $region41
    $region40: #{tpu_custom_call.1} parent=1 // pred_region
      _
    $region41: #{tpu_custom_call.1} parent=1 // pred_fallthru
      _
    // Predicated region
    $region42: #{tpu_custom_call.1} parent=1 // pred_check
      _
    $region43: #{tpu_custom_call.1} parent=1 // pred_check_branch
      %186 = sbr.rel (0) target = $region45
    $region44: #{tpu_custom_call.1} parent=1 // pred_region
      _
    $region45: #{tpu_custom_call.1} parent=1 // pred_fallthru
      _
    %187 = vsyncpa [#allocation6], 1
    %188 = vsyncpa [#allocation8], 1

</llo_original>
